<compile_context>
chip_gen: v7x
topology: tpu7x:2x2x1
jax: 0.10.0
libtpu: 0.0.40
codegen_flags: <defaults>
</compile_context>

<pallas_src>
import functools

import jax
import jax.numpy as jnp
from jax import lax
from jax.experimental import pallas as pl
from jax.experimental.pallas import tpu as pltpu


def _neural_kernel_body(scalars_ref, a1_ref, b1_ref, z1_ref, z2_ref, o_ref, *,
                        rq_int_alpha, inner_bf16):
    # scalars_ref (SMEM, f32[6]):
    #  [0] w0 * rbf_sv^2        [1] -0.5 / rbf_l^2
    #  [2] w2 * rq_sv^2         [3] 0.5 / (rq_alpha * rq_l^2)
    #  [4] rq_alpha             [5] bias of nn.Linear(3,1)
    if inner_bf16:
        # bf16 EUP (v6e/v7x): halves transcendental width for the inner terms.
        _exp_i = lambda v: jnp.exp(v.astype(jnp.bfloat16)).astype(jnp.float32)
        _log_i = lambda v: jnp.log(v.astype(jnp.bfloat16)).astype(jnp.float32)
    else:
        _exp_i, _log_i = jnp.exp, jnp.log

    dn = (((1,), (1,)), ((), ()))        # contract last dims of both (no .T)

    # sqdist directly from one augmented matmul (MXU); clamp for cancellation.
    sqdist = jnp.maximum(
        lax.dot_general(a1_ref[...], b1_ref[...], dn,
                        preferred_element_type=jnp.float32), 0.0)   # (TM, TN)

    # Linear-kernel term; rows pre-centered / pre-scaled in the wrapper.
    lin_term = lax.dot_general(z1_ref[...], z2_ref[...], dn,
                               preferred_element_type=jnp.float32)  # (TM, TN)

    rbf_coef, rbf_gamma = scalars_ref[0], scalars_ref[1]
    rq_coef, rq_scale = scalars_ref[2], scalars_ref[3]
    bias = scalars_ref[5]

    rbf_term = rbf_coef * _exp_i(rbf_gamma * sqdist)

    rq_base = 1.0 + rq_scale * sqdist
    if rq_int_alpha is not None:
        # Static small-integer alpha: (1 + s*d)^(-a) = recip ** a, no exp/log.
        inv = pl.reciprocal(rq_base, approx=False)
        pw = inv
        for _ in range(rq_int_alpha - 1):
            pw = pw * inv
        rq_term = rq_coef * pw
    else:
        rq_alpha = scalars_ref[4]
        rq_term = rq_coef * _exp_i(-rq_alpha * _log_i(rq_base))

    # Final exp always in f32 for output accuracy.
    o_ref[...] = jnp.exp(rbf_term + lin_term + rq_term + bias)


def _supports_bf16_eup():
    """bf16 EUP only on v6e / v7x; v5e (and non-TPU) must stay f32."""
    try:
        dev = jax.devices()[0]
        if dev.platform != "tpu":
            return False
        kind = dev.device_kind.lower()
        return ("v6" in kind) or ("v7" in kind)
    except Exception:
        return False


def neural_kernel(x1, x2, params, *, tile_m=512, tile_n=1024, use_bf16_eup=None):
    """Fused Neural_kernel forward.  x1: (N, D), x2: (M, D) -> (N, M)."""
    x1 = jnp.asarray(x1, jnp.float32)
    x2 = jnp.asarray(x2, jnp.float32)
    N, D = x1.shape
    M, D2 = x2.shape
    assert D == D2

    if use_bf16_eup is None:
        use_bf16_eup = _supports_bf16_eup()

    # --- padding & tiles: N -> mult of 8, M -> mult of 128, always ---
    N_pad = -(-N // 8) * 8
    M_pad = -(-M // 128) * 128
    if N_pad <= tile_m:
        TM = N_pad
    else:
        assert tile_m % 8 == 0
        TM = tile_m
        N_pad = -(-N_pad // TM) * TM
    if M_pad <= tile_n:
        TN = M_pad
    else:
        assert tile_n % 128 == 0
        TN = tile_n
        M_pad = -(-M_pad // TN) * TN

    # v7x has 2 TensorCores: make sure the grid has >= 2 blocks when possible.
    if (N_pad // TM == 1) and (M_pad // TN == 1):
        if TN >= 256 and TN % 256 == 0:
            TN //= 2                      # stays a multiple of 128
        elif TM >= 16 and TM % 16 == 0:
            TM //= 2                      # stays a multiple of 8

    if N_pad != N:
        x1 = jnp.pad(x1, ((0, N_pad - N), (0, 0)))
    if M_pad != M:
        x2 = jnp.pad(x2, ((0, M_pad - M), (0, 0)))

    # --- constant folding / per-row precompute in the wrapper ---
    p = {k: jnp.asarray(v, jnp.float32) for k, v in params.items()}
    w = p["mix_w"]
    b = p["mix_b"]
    rbf_l, rbf_sv = p["rbf_length_scale"], p["rbf_signal_variance"]
    lin_sv = p["lin_signal_variance"]
    rq_l, rq_sv, rq_a = p["rq_length_scale"], p["rq_signal_variance"], p["rq_alpha"]

    scalars = jnp.stack([
        w[0] * rbf_sv * rbf_sv,          # w0 * sv_rbf^2
        -0.5 / (rbf_l * rbf_l),          # RBF exponent scale
        w[2] * rq_sv * rq_sv,            # w2 * sv_rq^2
        0.5 / (rq_a * rq_l * rq_l),      # RQ base scale
        rq_a,                            # alpha (generic path only)
        b,                               # bias of nn.Linear(3,1)
    ]).astype(jnp.float32)

    # Static small-integer alpha -> reciprocal specialization (no exp/log).
    rq_int_alpha = None
    try:
        a_val = float(rq_a)
        a_round = int(round(a_val))
        if abs(a_val - a_round) < 1e-12 and 1 <= a_round <= 4:
            rq_int_alpha = a_round
    except Exception:                    # traced alpha -> generic path
        rq_int_alpha = None

    # Augmented features: a1 @ b1.T == sqdist (row norms / -2 folded into MXU).
    x1_sq = jnp.sum(x1 * x1, axis=1, keepdims=True)            # (N_pad, 1)
    x2_sq = jnp.sum(x2 * x2, axis=1, keepdims=True)            # (M_pad, 1)
    ones_n = jnp.ones((N_pad, 1), jnp.float32)
    ones_m = jnp.ones((M_pad, 1), jnp.float32)
    a1 = jnp.concatenate([-2.0 * x1, x1_sq, ones_n], axis=1)   # (N_pad, D+2)
    b1 = jnp.concatenate([x2, ones_m, x2_sq], axis=1)          # (M_pad, D+2)

    # Linear kernel rows, with w1 * |lin_sv| folded into the per-dim scales.
    ls = p["lin_length_scales"].reshape(1, D)
    center = p["lin_center"].reshape(1, D)
    lin_scale = jnp.sqrt(jnp.abs(w[1]) * jnp.abs(lin_sv))
    z1 = (x1 - center) * ((jnp.sign(w[1]) * lin_scale) / ls)   # (N_pad, D)
    z2 = (x2 - center) * (lin_scale / ls)                      # (M_pad, D)

    grid = (N_pad // TM, M_pad // TN)
    smem_spec = pl.BlockSpec(memory_space=pltpu.MemorySpace.SMEM)

    n_trans_per_elem = 2 + (1 if rq_int_alpha is not None else 2)
    out = pl.pallas_call(
        functools.partial(_neural_kernel_body,
                          rq_int_alpha=rq_int_alpha,
                          inner_bf16=use_bf16_eup),
        out_shape=jax.ShapeDtypeStruct((N_pad, M_pad), jnp.float32),
        grid=grid,
        in_specs=[
            smem_spec,                                          # scalars (SMEM)
            pl.BlockSpec((TM, D + 2), lambda i, j: (i, 0)),     # a1 tile
            pl.BlockSpec((TN, D + 2), lambda i, j: (j, 0)),     # b1 tile
            pl.BlockSpec((TM, D), lambda i, j: (i, 0)),         # z1 tile
            pl.BlockSpec((TN, D), lambda i, j: (j, 0)),         # z2 tile
        ],
        out_specs=pl.BlockSpec((TM, TN), lambda i, j: (i, j)),
        compiler_params=pltpu.CompilerParams(
            dimension_semantics=("parallel", "parallel"),
            vmem_limit_bytes=32 * 1024 * 1024,
        ),
        cost_estimate=pl.CostEstimate(
            flops=2 * N_pad * M_pad * (2 * D + 2) + 10 * N_pad * M_pad,
            transcendentals=n_trans_per_elem * N_pad * M_pad,
            bytes_accessed=4 * (N_pad * M_pad
                                + (N_pad + M_pad) * (2 * D + 2)),
        ),
    )(scalars, a1, b1, z1, z2)

    return out[:N, :M]


def build_params(input_dim, key):
    """Deterministic parameter init matching the PyTorch module's shapes."""
    kw, kb = jax.random.split(key)
    return {
        # RBFKernel()
        "rbf_length_scale": jnp.float32(1.0),
        "rbf_signal_variance": jnp.float32(1.0),
        # LinearKernel(input_dim)
        "lin_length_scales": jnp.ones((input_dim,), jnp.float32),
        "lin_signal_variance": jnp.float32(1.0),
        "lin_center": jnp.zeros((input_dim,), jnp.float32),
        # RationalQuadraticKernel()
        "rq_length_scale": jnp.float32(1.0),
        "rq_signal_variance": jnp.float32(1.0),
        "rq_alpha": jnp.float32(1.0),
        # nn.Linear(3, 1) (kept small so exp() stays bounded)
        "mix_w": 0.3 * jax.random.normal(kw, (3,), jnp.float32),
        "mix_b": 0.1 * jax.random.normal(kb, (), jnp.float32),
    }


def neural_kernel_reference(x1, x2, p):
    """Pure-JAX reference (mirrors the PyTorch forward)."""
    x1 = x1.astype(jnp.float32)
    x2 = x2.astype(jnp.float32)
    sqdist = (jnp.sum(x1 ** 2, 1)[:, None] + jnp.sum(x2 ** 2, 1)[None, :]
              - 2.0 * x1 @ x2.T)
    var1 = p["rbf_signal_variance"] ** 2 * jnp.exp(
        -0.5 / p["rbf_length_scale"] ** 2 * sqdist)
    z1 = (x1 - p["lin_center"]) / p["lin_length_scales"]
    z2 = (x2 - p["lin_center"]) / p["lin_length_scales"]
    var2 = (z1 @ z2.T) * jnp.abs(p["lin_signal_variance"])
    var3 = p["rq_signal_variance"] ** 2 * jnp.power(
        1.0 + 0.5 * sqdist / p["rq_alpha"] / p["rq_length_scale"] ** 2,
        -p["rq_alpha"])
    stacked = jnp.stack((var1, var2, var3), axis=-1)
    mixed = stacked @ p["mix_w"] + p["mix_b"]
    return jnp.exp(mixed)


# TODO(synk): PERKernel is instantiated by the PyTorch module but never used
# in Neural_kernel.forward, so it is intentionally not implemented here.

if __name__ == "__main__":
    key = jax.random.PRNGKey(0)
    k1, k2, kp, k3, k4 = jax.random.split(key, 5)

    # 1) Small single-tile check (matches the module's toy usage), f32 path.
    N, M, D = 8, 8, 4
    x1 = jax.random.normal(k1, (N, D), jnp.float32)
    x2 = jax.random.normal(k2, (M, D), jnp.float32)
    params = build_params(D, kp)
    out = jax.block_until_ready(neural_kernel(x1, x2, params, use_bf16_eup=False))
    ref = neural_kernel_reference(x1, x2, params)
    assert out.shape == (N, M)
    assert jnp.allclose(out, ref, rtol=2e-4, atol=1e-5), "small-case mismatch"

    # 2) Multi-tile + row/col padding check (2D pipelined grid), f32 path.
    N2, M2, D2 = 300, 700, 8
    x1b = jax.random.normal(k3, (N2, D2), jnp.float32)
    x2b = jax.random.normal(k4, (M2, D2), jnp.float32)
    params_b = build_params(D2, kp)
    out_b = jax.block_until_ready(
        neural_kernel(x1b, x2b, params_b, tile_m=256, tile_n=512,
                      use_bf16_eup=False))
    ref_b = neural_kernel_reference(x1b, x2b, params_b)
    assert out_b.shape == (N2, M2)
    assert jnp.allclose(out_b, ref_b, rtol=2e-4, atol=1e-5), "multi-tile mismatch"

    # 3) Generic (non-integer alpha) RQ path, f32, strict tolerance.
    params_g = dict(params)
    params_g["rq_alpha"] = jnp.float32(1.7)
    out_g = jax.block_until_ready(
        neural_kernel(x1, x2, params_g, use_bf16_eup=False))
    ref_g = neural_kernel_reference(x1, x2, params_g)
    assert jnp.allclose(out_g, ref_g, rtol=2e-4, atol=1e-5), "generic-alpha mismatch"

    # 4) Default (auto) path: bf16 inner EUP on v6e/v7x, f32 elsewhere; also
    #    exercises the default large tiles and the 1x1 -> 1x2 grid split.
    out_auto = jax.block_until_ready(neural_kernel(x1b, x2b, params_b))
    assert out_auto.shape == (N2, M2)
    assert bool(jnp.all(jnp.isfinite(out_auto)))
    assert jnp.allclose(out_auto, ref_b, rtol=3e-2, atol=1e-3), "auto-path mismatch"

    print("KERNEL_OK")
</pallas_src>

<mosaic_0001>
module attributes {stable_mosaic.version = 11 : i64} {
  func.func @_neural_kernel_body(%arg0: i32, %arg1: i32, %arg2: memref<6xf32, #tpu.memory_space<smem>>, %arg3: memref<8x6xf32, #tpu.memory_space<vmem>>, %arg4: memref<128x6xf32, #tpu.memory_space<vmem>>, %arg5: memref<8x4xf32, #tpu.memory_space<vmem>>, %arg6: memref<128x4xf32, #tpu.memory_space<vmem>>, %arg7: memref<8x128xf32, #tpu.memory_space<vmem>>) attributes {dimension_semantics = [#tpu.dimension_semantics<parallel>, #tpu.dimension_semantics<parallel>], iteration_bounds = array<i64: 1, 1>, scalar_prefetch = 0 : i64, scratch_operands = 0 : i64, tpu.core_type = #tpu.core_type<tc>, window_params = [{transform_indices = @transform_0, window_bounds = array<i64: 6>}, {transform_indices = @transform_1, window_bounds = array<i64: 8, 6>}, {transform_indices = @transform_2, window_bounds = array<i64: 128, 6>}, {transform_indices = @transform_3, window_bounds = array<i64: 8, 4>}, {transform_indices = @transform_4, window_bounds = array<i64: 128, 4>}, {transform_indices = @transform_5, window_bounds = array<i64: 8, 128>}]} {
    %c0 = arith.constant 0 : index
    %c0_0 = arith.constant 0 : index
    %0 = vector.load %arg3[%c0, %c0_0] : memref<8x6xf32, #tpu.memory_space<vmem>>, vector<8x6xf32>
    %c0_1 = arith.constant 0 : index
    %c0_2 = arith.constant 0 : index
    %1 = vector.load %arg4[%c0_1, %c0_2] : memref<128x6xf32, #tpu.memory_space<vmem>>, vector<128x6xf32>
    %cst = arith.constant dense<0.000000e+00> : vector<8x128xf32>
    %2 = tpu.matmul %0, %1, %cst {dimension_numbers = #tpu.dot_dimension_numbers<[1], [1], [0], [0], [0, 0, 1, 0], [], []>} : vector<8x6xf32>, vector<128x6xf32>, vector<8x128xf32> -> vector<8x128xf32>
    %cst_3 = arith.constant 0.000000e+00 : f32
    %3 = vector.broadcast %cst_3 : f32 to vector<8x128xf32>
    %4 = arith.maximumf %2, %3 : vector<8x128xf32>
    %c0_4 = arith.constant 0 : index
    %c0_5 = arith.constant 0 : index
    %5 = vector.load %arg5[%c0_4, %c0_5] : memref<8x4xf32, #tpu.memory_space<vmem>>, vector<8x4xf32>
    %c0_6 = arith.constant 0 : index
    %c0_7 = arith.constant 0 : index
    %6 = vector.load %arg6[%c0_6, %c0_7] : memref<128x4xf32, #tpu.memory_space<vmem>>, vector<128x4xf32>
    %cst_8 = arith.constant dense<0.000000e+00> : vector<8x128xf32>
    %7 = tpu.matmul %5, %6, %cst_8 {dimension_numbers = #tpu.dot_dimension_numbers<[1], [1], [0], [0], [0, 0, 1, 0], [], []>} : vector<8x4xf32>, vector<128x4xf32>, vector<8x128xf32> -> vector<8x128xf32>
    %c0_9 = arith.constant 0 : index
    %8 = memref.load %arg2[%c0_9] : memref<6xf32, #tpu.memory_space<smem>>
    %c1 = arith.constant 1 : index
    %9 = memref.load %arg2[%c1] : memref<6xf32, #tpu.memory_space<smem>>
    %c2 = arith.constant 2 : index
    %10 = memref.load %arg2[%c2] : memref<6xf32, #tpu.memory_space<smem>>
    %c3 = arith.constant 3 : index
    %11 = memref.load %arg2[%c3] : memref<6xf32, #tpu.memory_space<smem>>
    %c5 = arith.constant 5 : index
    %12 = memref.load %arg2[%c5] : memref<6xf32, #tpu.memory_space<smem>>
    %13 = vector.broadcast %9 : f32 to vector<8x128xf32>
    %14 = arith.mulf %13, %4 : vector<8x128xf32>
    %15 = math.exp %14 : vector<8x128xf32>
    %16 = vector.broadcast %8 : f32 to vector<8x128xf32>
    %17 = arith.mulf %16, %15 : vector<8x128xf32>
    %18 = vector.broadcast %11 : f32 to vector<8x128xf32>
    %19 = arith.mulf %18, %4 : vector<8x128xf32>
    %cst_10 = arith.constant 1.000000e+00 : f32
    %20 = vector.broadcast %cst_10 : f32 to vector<8x128xf32>
    %21 = arith.addf %20, %19 : vector<8x128xf32>
    %22 = tpu.reciprocal %21 : vector<8x128xf32> -> vector<8x128xf32>
    %23 = vector.broadcast %10 : f32 to vector<8x128xf32>
    %24 = arith.mulf %23, %22 : vector<8x128xf32>
    %25 = arith.addf %17, %7 : vector<8x128xf32>
    %26 = arith.addf %25, %24 : vector<8x128xf32>
    %27 = vector.broadcast %12 : f32 to vector<8x128xf32>
    %28 = arith.addf %26, %27 : vector<8x128xf32>
    %29 = math.exp %28 : vector<8x128xf32>
    %c0_11 = arith.constant 0 : index
    %c0_12 = arith.constant 0 : index
    %30 = vector.load %arg7[%c0_11, %c0_12] : memref<8x128xf32, #tpu.memory_space<vmem>>, vector<8x128xf32>
    tpu.vector_store %arg7[%c0_11, %c0_12], %29 {strides = array<i32>} : memref<8x128xf32, #tpu.memory_space<vmem>>, vector<8x128xf32>,
    return
  }
  func.func @transform_0(%arg0: i32, %arg1: i32) -> i32 {
    %c0_i32 = arith.constant 0 : i32
    %c0_i32_0 = arith.constant 0 : i32
    return %c0_i32 : i32
  }
  func.func @transform_1(%arg0: i32, %arg1: i32) -> (i32, i32) {
    %c0_i32 = arith.constant 0 : i32
    %c0_i32_0 = arith.constant 0 : i32
    return %arg0, %c0_i32 : i32, i32
  }
  func.func @transform_2(%arg0: i32, %arg1: i32) -> (i32, i32) {
    %c0_i32 = arith.constant 0 : i32
    %c0_i32_0 = arith.constant 0 : i32
    return %arg1, %c0_i32 : i32, i32
  }
  func.func @transform_3(%arg0: i32, %arg1: i32) -> (i32, i32) {
    %c0_i32 = arith.constant 0 : i32
    %c0_i32_0 = arith.constant 0 : i32
    return %arg0, %c0_i32 : i32, i32
  }
  func.func @transform_4(%arg0: i32, %arg1: i32) -> (i32, i32) {
    %c0_i32 = arith.constant 0 : i32
    %c0_i32_0 = arith.constant 0 : i32
    return %arg1, %c0_i32 : i32, i32
  }
  func.func @transform_5(%arg0: i32, %arg1: i32) -> (i32, i32) {
    %c0_i32 = arith.constant 0 : i32
    return %arg0, %arg1 : i32, i32
  }
}

</mosaic_0001>

<llo_original>
// kernel: tpu_custom_call.1
$region0: #{tpu_custom_call.1}
  #allocation0 [shape = 'u32[]', space=smem, size = 0x4, offset = 0x4, fixed_abs, tag = 'smem constant byte address 0x4 - core index']
  #allocation1 [shape = 'u32[144,128]{1,0:T(1,128)}', space=vmem, size = 0x12000, scoped, tag = 'internal scratch']
  %s0 = inlined_call_operand.vmem [shape: f32[6], index: 0, kind: input, shape index: {}]
  %s1 = inlined_call_operand.vmem [shape: f32[8,6], index: 1, kind: input, shape index: {}]
  %s2 = inlined_call_operand.vmem [shape: f32[128,6], index: 2, kind: input, shape index: {}]
  %s3 = inlined_call_operand.vmem [shape: f32[8,4], index: 3, kind: input, shape index: {}]
  %s4 = inlined_call_operand.vmem [shape: f32[128,4], index: 4, kind: input, shape index: {}]
  %s5 = inlined_call_operand.hbm [shape: f32[8,128], index: 5, kind: output, shape index: {}]
  %s6 = sld [smem:[#allocation0]]
  $region34: #{tpu_custom_call.1} parent=0
    _
  %s8 = ssub.s32 1, %s6
  %s9 = scalar_select 0, %s8, %s6
  $region1: #{tpu_custom_call.1} parent=0
    #allocation2 [shape = 'u8[512]{0}', space=smem, size = 0x200, scoped, tag = 'input window, operand 0, single buffered']
    #allocation3 [shape = 's32[1]{0}', space=sflag, size = 0x4, scoped, tag = 'scoped memory for tpu_custom_call.1']
    #allocation4 [shape = 's32[1]{0}', space=sflag, size = 0x4, scoped, tag = 'scoped memory for tpu_custom_call.1']
    #allocation5 [shape = 'u8[4096]{0}', space=vmem, size = 0x1000, scoped, tag = 'output window, operand 0, single buffered']
    %10 = vsyncpa [#allocation4], 0
    %11 = vsyncpa [#allocation3], 0
    // Predicated region
    $region2: #{tpu_custom_call.1} parent=1 // pred_check
      _
    $region3: #{tpu_custom_call.1} parent=1 // pred_check_branch
      %13 = sbr.rel (0) target = $region5
    $region4: #{tpu_custom_call.1} parent=1 // pred_region
      %s15 = ssub.s32 16, 16
      %16 = vsyncadd [#allocation4], %s15
      %s18 = sshll.u32 %s0, 4
      %s19 = int_to_ptr.vmem [resolvable:$true] %s18
      %21 = dma.vmem_to_smem %s19, 16, [#allocation2], [#allocation4]
    $region5: #{tpu_custom_call.1} parent=1 // pred_fallthru
      _
    // Predicated region
    $region6: #{tpu_custom_call.1} parent=1 // pred_check
      _
    $region7: #{tpu_custom_call.1} parent=1 // pred_check_branch
      %23 = sbr.rel (0) target = $region9
    $region8: #{tpu_custom_call.1} parent=1 // pred_region
      _
    $region9: #{tpu_custom_call.1} parent=1 // pred_fallthru
      _
    // Predicated region
    $region10: #{tpu_custom_call.1} parent=1 // pred_check
      _
    $region11: #{tpu_custom_call.1} parent=1 // pred_check_branch
      %25 = sbr.rel (0) target = $region13
    $region12: #{tpu_custom_call.1} parent=1 // pred_region
      _
    $region13: #{tpu_custom_call.1} parent=1 // pred_fallthru
      _
    // Predicated region
    $region14: #{tpu_custom_call.1} parent=1 // pred_check
      _
    $region15: #{tpu_custom_call.1} parent=1 // pred_check_branch
      %27 = sbr.rel (0) target = $region17
    $region16: #{tpu_custom_call.1} parent=1 // pred_region
      _
    $region17: #{tpu_custom_call.1} parent=1 // pred_fallthru
      _
    // Predicated region
    $region18: #{tpu_custom_call.1} parent=1 // pred_check
      _
    $region19: #{tpu_custom_call.1} parent=1 // pred_check_branch
      %29 = sbr.rel (0) target = $region21
    $region20: #{tpu_custom_call.1} parent=1 // pred_region
      _
    $region21: #{tpu_custom_call.1} parent=1 // pred_fallthru
      _
    // Predicated region
    $region22: #{tpu_custom_call.1} parent=1 // pred_check
      _
    $region23: #{tpu_custom_call.1} parent=1 // pred_check_branch
      %31 = sbr.rel (0) target = $region25
    $region24: #{tpu_custom_call.1} parent=1 // pred_region
      %32 = dma.done [#allocation4], 16
    $region25: #{tpu_custom_call.1} parent=1 // pred_fallthru
      _
    %33 = sfence
    %v34 = vld [vmem:[%s1] sm:$0xff]
    %v35 = vld [vmem:[%s2] sm:$0xff]
    %v36 = vld [vmem:[%s2 + $0x8] sm:$0xff]
    %v37 = vld [vmem:[%s2 + $0x10] sm:$0xff]
    %v38 = vld [vmem:[%s2 + $0x18] sm:$0xff]
    %v39 = vld [vmem:[%s2 + $0x20] sm:$0xff]
    %v40 = vld [vmem:[%s2 + $0x28] sm:$0xff]
    %v41 = vld [vmem:[%s2 + $0x30] sm:$0xff]
    %v42 = vld [vmem:[%s2 + $0x38] sm:$0xff]
    %v43 = vld [vmem:[%s2 + $0x40] sm:$0xff]
    %v44 = vld [vmem:[%s2 + $0x48] sm:$0xff]
    %v45 = vld [vmem:[%s2 + $0x50] sm:$0xff]
    %v46 = vld [vmem:[%s2 + $0x58] sm:$0xff]
    %v47 = vld [vmem:[%s2 + $0x60] sm:$0xff]
    %v48 = vld [vmem:[%s2 + $0x68] sm:$0xff]
    %v49 = vld [vmem:[%s2 + $0x70] sm:$0xff]
    %v50 = vld [vmem:[%s2 + $0x78] sm:$0xff]
    %vm51 = vcmask 48128
    %v53 = vsel %vm51, %v34, 0
    %v56 = vsel %vm51, %v35, 0
    %v59 = vsel %vm51, %v36, 0
    %v62 = vsel %vm51, %v37, 0
    %v65 = vsel %vm51, %v38, 0
    %v68 = vsel %vm51, %v39, 0
    %v71 = vsel %vm51, %v40, 0
    %v74 = vsel %vm51, %v41, 0
    %v77 = vsel %vm51, %v42, 0
    %v80 = vsel %vm51, %v43, 0
    %v83 = vsel %vm51, %v44, 0
    %v86 = vsel %vm51, %v45, 0
    %v89 = vsel %vm51, %v46, 0
    %v92 = vsel %vm51, %v47, 0
    %v95 = vsel %vm51, %v48, 0
    %v98 = vsel %vm51, %v49, 0
    %v101 = vsel %vm51, %v50, 0
    %103 = vmatprep.subr.mxu0 0.0
    %104 = vmatpush1.xpose.msra.mxu0 %v56
    %105 = vmatprep.subr.mxu0 0.0
    %106 = vmatpush1.xpose.msra.mxu0 %v59
    %107 = vmatprep.subr.mxu0 0.0
    %108 = vmatpush1.xpose.msra.mxu0 %v62
    %109 = vmatprep.subr.mxu0 0.0
    %110 = vmatpush1.xpose.msra.mxu0 %v65
    %111 = vmatprep.subr.mxu0 0.0
    %112 = vmatpush1.xpose.msra.mxu0 %v68
    %113 = vmatprep.subr.mxu0 0.0
    %114 = vmatpush1.xpose.msra.mxu0 %v71
    %115 = vmatprep.subr.mxu0 0.0
    %116 = vmatpush1.xpose.msra.mxu0 %v74
    %117 = vmatprep.subr.mxu0 0.0
    %118 = vmatpush1.xpose.msra.mxu0 %v77
    %119 = vmatprep.subr.mxu0 0.0
    %120 = vmatpush1.xpose.msra.mxu0 %v80
    %121 = vmatprep.subr.mxu0 0.0
    %122 = vmatpush1.xpose.msra.mxu0 %v83
    %123 = vmatprep.subr.mxu0 0.0
    %124 = vmatpush1.xpose.msra.mxu0 %v86
    %125 = vmatprep.subr.mxu0 0.0
    %126 = vmatpush1.xpose.msra.mxu0 %v89
    %127 = vmatprep.subr.mxu0 0.0
    %128 = vmatpush1.xpose.msra.mxu0 %v92
    %129 = vmatprep.subr.mxu0 0.0
    %130 = vmatpush1.xpose.msra.mxu0 %v95
    %131 = vmatprep.subr.mxu0 0.0
    %132 = vmatpush1.xpose.msra.mxu0 %v98
    %133 = vmatprep.subr.mxu0 0.0
    %134 = vmatpush1.xpose.msra.mxu0 %v101
    %135 = vmatprep.subr.mxu0 0.0
    %136 = vmatpush1.xpose.msra.mxu0 0.0
    %137 = vmatprep.subr.mxu0 0.0
    %138 = vmatpush1.xpose.msra.mxu0 0.0
    %139 = vmatprep.subr.mxu0 0.0
    %140 = vmatpush1.xpose.msra.mxu0 0.0
    %141 = vmatprep.subr.mxu0 0.0
    %142 = vmatpush1.xpose.msra.mxu0 0.0
    %143 = vmatprep.subr.mxu0 0.0
    %144 = vmatpush1.xpose.msra.mxu0 0.0
    %145 = vmatprep.subr.mxu0 0.0
    %146 = vmatpush1.xpose.msra.mxu0 0.0
    %147 = vmatprep.subr.mxu0 0.0
    %148 = vmatpush1.xpose.msra.mxu0 0.0
    %149 = vmatprep.subr.mxu0 0.0
    %150 = vmatpush1.xpose.msra.mxu0 0.0
    %151 = vmatprep.subr.mxu0 0.0
    %152 = vmatpush1.xpose.msra.mxu0 0.0
    %153 = vmatprep.subr.mxu0 0.0
    %154 = vmatpush1.xpose.msra.mxu0 0.0
    %155 = vmatprep.subr.mxu0 0.0
    %156 = vmatpush1.xpose.msra.mxu0 0.0
    %157 = vmatprep.subr.mxu0 0.0
    %158 = vmatpush1.xpose.msra.mxu0 0.0
    %159 = vmatprep.subr.mxu0 0.0
    %160 = vmatpush1.xpose.msra.mxu0 0.0
    %161 = vmatprep.subr.mxu0 0.0
    %162 = vmatpush1.xpose.msra.mxu0 0.0
    %163 = vmatprep.subr.mxu0 0.0
    %164 = vmatpush1.xpose.msra.mxu0 0.0
    %165 = vmatprep.subr.mxu0 0.0
    %166 = vmatpush1.xpose.msra.mxu0 0.0
    %167 = vmatprep.mubr.f32.mxu0 0.0
    %168 = vmatmul.mubr.f32.gmra.mrb[0].mxu0 %v53
    %v169 = vpop.f32.mrb[0].mxu0
    %v170 = vadd.f32 0.0, %v169
    %v171 = vpop.f32.mrb[0].mxu0
    %172 = vdwg.mxu0
    %v173 = vmax.f32 %v170, 0.0
    %v174 = vld [vmem:[%s3] sm:$0xff]
    %v175 = vld [vmem:[%s4] sm:$0xff]
    %v176 = vld [vmem:[%s4 + $0x8] sm:$0xff]
    %v177 = vld [vmem:[%s4 + $0x10] sm:$0xff]
    %v178 = vld [vmem:[%s4 + $0x18] sm:$0xff]
    %v179 = vld [vmem:[%s4 + $0x20] sm:$0xff]
    %v180 = vld [vmem:[%s4 + $0x28] sm:$0xff]
    %v181 = vld [vmem:[%s4 + $0x30] sm:$0xff]
    %v182 = vld [vmem:[%s4 + $0x38] sm:$0xff]
    %v183 = vld [vmem:[%s4 + $0x40] sm:$0xff]
    %v184 = vld [vmem:[%s4 + $0x48] sm:$0xff]
    %v185 = vld [vmem:[%s4 + $0x50] sm:$0xff]
    %v186 = vld [vmem:[%s4 + $0x58] sm:$0xff]
    %v187 = vld [vmem:[%s4 + $0x60] sm:$0xff]
    %v188 = vld [vmem:[%s4 + $0x68] sm:$0xff]
    %v189 = vld [vmem:[%s4 + $0x70] sm:$0xff]
    %v190 = vld [vmem:[%s4 + $0x78] sm:$0xff]
    %vm191 = vcmask 31744
    %v193 = vsel %vm191, %v174, 0
    %v196 = vsel %vm191, %v175, 0
    %v199 = vsel %vm191, %v176, 0
    %v202 = vsel %vm191, %v177, 0
    %v205 = vsel %vm191, %v178, 0
    %v208 = vsel %vm191, %v179, 0
    %v211 = vsel %vm191, %v180, 0
    %v214 = vsel %vm191, %v181, 0
    %v217 = vsel %vm191, %v182, 0
    %v220 = vsel %vm191, %v183, 0
    %v223 = vsel %vm191, %v184, 0
    %v226 = vsel %vm191, %v185, 0
    %v229 = vsel %vm191, %v186, 0
    %v232 = vsel %vm191, %v187, 0
    %v235 = vsel %vm191, %v188, 0
    %v238 = vsel %vm191, %v189, 0
    %v241 = vsel %vm191, %v190, 0
    %243 = vmatprep.subr.mxu0 0.0
    %244 = vmatpush1.xpose.msra.mxu0 %v196
    %245 = vmatprep.subr.mxu0 0.0
    %246 = vmatpush1.xpose.msra.mxu0 %v199
    %247 = vmatprep.subr.mxu0 0.0
    %248 = vmatpush1.xpose.msra.mxu0 %v202
    %249 = vmatprep.subr.mxu0 0.0
    %250 = vmatpush1.xpose.msra.mxu0 %v205
    %251 = vmatprep.subr.mxu0 0.0
    %252 = vmatpush1.xpose.msra.mxu0 %v208
    %253 = vmatprep.subr.mxu0 0.0
    %254 = vmatpush1.xpose.msra.mxu0 %v211
    %255 = vmatprep.subr.mxu0 0.0
    %256 = vmatpush1.xpose.msra.mxu0 %v214
    %257 = vmatprep.subr.mxu0 0.0
    %258 = vmatpush1.xpose.msra.mxu0 %v217
    %259 = vmatprep.subr.mxu0 0.0
    %260 = vmatpush1.xpose.msra.mxu0 %v220
    %261 = vmatprep.subr.mxu0 0.0
    %262 = vmatpush1.xpose.msra.mxu0 %v223
    %263 = vmatprep.subr.mxu0 0.0
    %264 = vmatpush1.xpose.msra.mxu0 %v226
    %265 = vmatprep.subr.mxu0 0.0
    %266 = vmatpush1.xpose.msra.mxu0 %v229
    %267 = vmatprep.subr.mxu0 0.0
    %268 = vmatpush1.xpose.msra.mxu0 %v232
    %269 = vmatprep.subr.mxu0 0.0
    %270 = vmatpush1.xpose.msra.mxu0 %v235
    %271 = vmatprep.subr.mxu0 0.0
    %272 = vmatpush1.xpose.msra.mxu0 %v238
    %273 = vmatprep.subr.mxu0 0.0
    %274 = vmatpush1.xpose.msra.mxu0 %v241
    %275 = vmatprep.subr.mxu0 0.0
    %276 = vmatpush1.xpose.msra.mxu0 0.0
    %277 = vmatprep.subr.mxu0 0.0
    %278 = vmatpush1.xpose.msra.mxu0 0.0
    %279 = vmatprep.subr.mxu0 0.0
    %280 = vmatpush1.xpose.msra.mxu0 0.0
    %281 = vmatprep.subr.mxu0 0.0
    %282 = vmatpush1.xpose.msra.mxu0 0.0
    %283 = vmatprep.subr.mxu0 0.0
    %284 = vmatpush1.xpose.msra.mxu0 0.0
    %285 = vmatprep.subr.mxu0 0.0
    %286 = vmatpush1.xpose.msra.mxu0 0.0
    %287 = vmatprep.subr.mxu0 0.0
    %288 = vmatpush1.xpose.msra.mxu0 0.0
    %289 = vmatprep.subr.mxu0 0.0
    %290 = vmatpush1.xpose.msra.mxu0 0.0
    %291 = vmatprep.subr.mxu0 0.0
    %292 = vmatpush1.xpose.msra.mxu0 0.0
    %293 = vmatprep.subr.mxu0 0.0
    %294 = vmatpush1.xpose.msra.mxu0 0.0
    %295 = vmatprep.subr.mxu0 0.0
    %296 = vmatpush1.xpose.msra.mxu0 0.0
    %297 = vmatprep.subr.mxu0 0.0
    %298 = vmatpush1.xpose.msra.mxu0 0.0
    %299 = vmatprep.subr.mxu0 0.0
    %300 = vmatpush1.xpose.msra.mxu0 0.0
    %301 = vmatprep.subr.mxu0 0.0
    %302 = vmatpush1.xpose.msra.mxu0 0.0
    %303 = vmatprep.subr.mxu0 0.0
    %304 = vmatpush1.xpose.msra.mxu0 0.0
    %305 = vmatprep.subr.mxu0 0.0
    %306 = vmatpush1.xpose.msra.mxu0 0.0
    %307 = vmatprep.mubr.f32.mxu0 0.0
    %308 = vmatmul.mubr.f32.gmra.mrb[0].mxu0 %v193
    %v309 = vpop.f32.mrb[0].mxu0
    %v310 = vadd.f32 0.0, %v309
    %v311 = vpop.f32.mrb[0].mxu0
    %312 = vdwg.mxu0
    %s313 = sld [smem:[#allocation2]]
    %s314 = sld [smem:[#allocation2 + $0x1]]
    %s315 = sld [smem:[#allocation2 + $0x2]]
    %s316 = sld [smem:[#allocation2 + $0x3]]
    %s317 = sld [smem:[#allocation2 + $0x5]]
    %v318 = vstv %s314
    %v319 = vmul.f32 %v318, %v173
    %v320 = vmul.f32 %v319, 1.442695
    %v321 = vpow.pop %v320
    %v322 = vstv %s313
    %v323 = vmul.f32 %v322, %v321
    %v324 = vstv %s316
    %v325 = vmul.f32 %v324, %v173
    %v326 = vadd.f32 %v325, 1.0
    %v327 = vrcp.pop %v326
    %v328 = vstv %s315
    %v329 = vmul.f32 %v328, %v327
    %v330 = vadd.f32 %v323, %v310
    %v331 = vadd.f32 %v330, %v329
    %v332 = vstv %s317
    %v333 = vadd.f32 %v331, %v332
    %v334 = vmul.f32 %v333, 1.442695
    %v335 = vpow.pop %v334
    %336 = vst [vmem:[#allocation5] sm:$0xff] %v335
    // Predicated region
    $region26: #{tpu_custom_call.1} parent=1 // pred_check
      _
    $region27: #{tpu_custom_call.1} parent=1 // pred_check_branch
      %338 = sbr.rel (0) target = $region29
    $region28: #{tpu_custom_call.1} parent=1 // pred_region
      %s340 = ssub.s32 128, 128
      %341 = vsyncadd [#allocation3], %s340
      %s343 = sshll.u32 [#allocation5], 4
      %s344 = int_to_ptr.vmem [resolvable:$true] %s343
      %346 = dma.vmem_to_hbm [thread:$0]  %s344, 128, %s5, [#allocation3]
    $region29: #{tpu_custom_call.1} parent=1 // pred_fallthru
      _
    // Predicated region
    $region30: #{tpu_custom_call.1} parent=1 // pred_check
      _
    $region31: #{tpu_custom_call.1} parent=1 // pred_check_branch
      %348 = sbr.rel (0) target = $region33
    $region32: #{tpu_custom_call.1} parent=1 // pred_region
      %349 = dma.done [#allocation3], 128
    $region33: #{tpu_custom_call.1} parent=1 // pred_fallthru
      _
    %350 = vsyncpa [#allocation3], 1
    %351 = vsyncpa [#allocation4], 1

</llo_original>
